<compile_context>
chip_gen: v6e
topology: v6e:2x2x1
jax: 0.10.0
libtpu: 0.0.40
codegen_flags: <defaults>
</compile_context>

<pallas_src>
import functools

import jax
import jax.numpy as jnp
from jax.experimental import pallas as pl
from jax.experimental.pallas import tpu as pltpu


# ---------------------------------------------------------------------------
# Host-side helpers
# ---------------------------------------------------------------------------
def _bilinear_matrix(out_size: int, in_size: int) -> jnp.ndarray:
    """A with A @ v == F.interpolate(v, mode='bilinear', align_corners=False)
    along one axis.  Identity when sizes match (covers the Identity branch)."""
    if out_size == in_size:
        return jnp.eye(out_size, dtype=jnp.float32)
    scale = in_size / out_size
    i = jnp.arange(out_size, dtype=jnp.float32)
    src = jnp.maximum((i + 0.5) * scale - 0.5, 0.0)        # PyTorch half-pixel
    i0 = jnp.clip(jnp.floor(src).astype(jnp.int32), 0, in_size - 1)
    i1 = jnp.minimum(i0 + 1, in_size - 1)
    frac = src - i0.astype(jnp.float32)
    rows = jnp.arange(out_size)
    a = jnp.zeros((out_size, in_size), jnp.float32)
    a = a.at[rows, i0].add(1.0 - frac)
    a = a.at[rows, i1].add(frac)
    return a


def _tpu_generation_params():
    """Per-generation knobs: VMEM budget/cap, #TensorCores, MXU lane width.

    v5e/v6e: 1 TensorCore, 128 MiB VMEM -> big blocks, a single grid step is
             fine (the grid is a serial loop on 1 TC).
    v7x    : 2 TensorCores, 64 MiB VMEM -> prefer >= 2 grid steps, tighter
             budget, 256-wide MXU alignment.
    """
    kind = ""
    try:
        kind = jax.devices()[0].device_kind.lower()
    except Exception:
        pass
    if "v7" in kind:
        return dict(vmem_budget=20 << 20, vmem_cap=44 << 20, num_tc=2, lane_align=256)
    if "v6" in kind:
        return dict(vmem_budget=56 << 20, vmem_cap=96 << 20, num_tc=1, lane_align=256)
    if "v5" in kind and ("lite" in kind or "v5e" in kind):
        return dict(vmem_budget=56 << 20, vmem_cap=96 << 20, num_tc=1, lane_align=128)
    # Unknown generation: conservative (v7x-like) settings.
    return dict(vmem_budget=20 << 20, vmem_cap=44 << 20, num_tc=2, lane_align=256)


def _choose_batch_block(n, hw_in, hw_out, *, in_bytes_per_img, out_bytes_per_img,
                        const_bytes_fn, vmem_budget, num_tc, lane_align):
    """Pick the largest batch block bb (a divisor of N) such that:
       * block lane dims bb*HW_in / bb*HW_out are multiples of 128 (or full),
       * double-buffered blocks + constants fit the per-generation VMEM budget,
       * preferring >= num_tc grid steps (v7x megacore) and lane widths aligned
         to the MXU width (256 on v6e/v7x, 128 on v5e)."""
    best = None
    for bb in range(1, n + 1):
        if n % bb:
            continue
        full = bb == n
        if not full and ((bb * hw_in) % 128 or (bb * hw_out) % 128):
            continue                              # would force masked / invalid blocks
        resident = 2 * bb * (in_bytes_per_img + out_bytes_per_img) + const_bytes_fn(bb)
        if resident > vmem_budget:
            continue
        steps = n // bb
        enough_cores = steps >= num_tc or n < num_tc
        aligned = full or (bb * hw_out) % lane_align == 0
        score = (enough_cores, aligned, bb)
        if best is None or score > best[0]:
            best = (score, bb)
    return best[1] if best is not None else n


# ---------------------------------------------------------------------------
# Kernel
# ---------------------------------------------------------------------------
def _stitch_kernel(*refs, mode, conv_first, bb, c_in, c_out,
                   h_in, w_in, h_out, w_out, mxu_dtype):
    """One grid step == one batch block.  All heavy work is 2-D MXU matmuls.

    x_ref : (C_in,  bb*HW_in)   bf16 (cast on the host -> half the HBM read)
    o_ref : (C_out, bb*HW_out)  lane-dense (>=128 wide) unmasked stores
    """
    if mode == "identity":
        x_ref, w_ref, b_ref, o_ref = refs
    elif mode == "kron":
        x_ref, ktb_ref, w_ref, b_ref, o_ref = refs
    else:  # "separable"
        x_ref, awt_ref, aht_ref, w_ref, b_ref, o_ref = refs

    x = x_ref[...]                       # (C_in, bb*HW_in)  bf16
    w = w_ref[...]                       # (C_out, C_in)     bf16
    bias = b_ref[...]                    # (C_out, 1)        f32

    if mode == "identity":
        # No resize matrix is passed at all in this branch (no dummy operand).
        y = jnp.dot(w, x, preferred_element_type=jnp.float32)

    elif mode == "kron":
        # Block-diagonal fused resize operator kron(I_bb, kron(Ah,Aw))^T:
        # both matmuls stay plain 2-D and lane-dense with zero in-kernel
        # reshapes/relayouts.
        ktb = ktb_ref[...]               # (bb*HW_in, bb*HW_out)  bf16
        if conv_first:                   # fewer rows through the resize matmul
            t = jnp.dot(w, x, preferred_element_type=jnp.float32)
            # TODO(synk): keep this second matmul in f32 if tighter parity with
            # the f32 PyTorch reference is ever needed (double bf16 quantization).
            y = jnp.dot(t.astype(mxu_dtype), ktb,
                        preferred_element_type=jnp.float32)
        else:
            t = jnp.dot(x, ktb, preferred_element_type=jnp.float32)
            y = jnp.dot(w, t.astype(mxu_dtype),
                        preferred_element_type=jnp.float32)

    else:
        # Separable bilinear resize (W-axis matmul, minor-dims transpose,
        # H-axis matmul).  Used above the kron size threshold where the fused
        # (HW_in, HW_out) operator would not fit VMEM (e.g. v7x's 64 MiB) and
        # where it would waste FLOPs.  The reshapes/transpose cost relayouts,
        # but the matrices are only a few KB.
        awt = awt_ref[...]               # (W_in, W_out)
        aht = aht_ref[...]               # (H_in, H_out)
        if conv_first:
            t = jnp.dot(w, x, preferred_element_type=jnp.float32).astype(mxu_dtype)
            c_mid = c_out
        else:
            t = x
            c_mid = c_in
        t = t.reshape(c_mid * bb * h_in, w_in)
        t = jnp.dot(t, awt, preferred_element_type=jnp.float32).astype(mxu_dtype)
        t = t.reshape(c_mid * bb, h_in, w_out)
        t = jnp.swapaxes(t, -1, -2)                      # XLU minor-dim transpose
        t = t.reshape(c_mid * bb * w_out, h_in)
        t = jnp.dot(t, aht, preferred_element_type=jnp.float32)
        if conv_first:
            y = t.reshape(c_out, bb * w_out * h_out)
        else:
            t = t.reshape(c_in, bb * w_out * h_out).astype(mxu_dtype)
            y = jnp.dot(w, t, preferred_element_type=jnp.float32)
        # NOTE: spatial flattening is (w, h) on this path; the wrapper un-permutes.

    y = y + bias                          # single broadcast per grid step
    o_ref[...] = y.astype(o_ref.dtype)    # lane-dense, unmasked store


# ---------------------------------------------------------------------------
# Wrapper
# ---------------------------------------------------------------------------
def conv_stitching_forward(x, conv_w, conv_b, out_spatial, *,
                           mxu_dtype=jnp.bfloat16,
                           kron_max_bytes=2 << 20):
    """x: (N, C_in, H_in, W_in); conv_w: (C_out, C_in, 1, 1); conv_b: (C_out,).

    out_spatial is the conv output spatial size; with the canonical 1x1/s1/p0
    stitching conv, conv2d_shape_inverse(out_spatial) == out_spatial, so it is
    also the bilinear-resize target."""
    n, c_in, h_in, w_in = x.shape
    c_out = conv_w.shape[0]
    h_r, w_r = out_spatial
    hw_in, hw_out = h_in * w_in, h_r * w_r
    needs_resize = (h_r, w_r) != (h_in, w_in)
    conv_first = c_out < c_in            # smaller channel count through the resize

    gen = _tpu_generation_params()
    in_bytes = jnp.dtype(mxu_dtype).itemsize
    out_bytes = jnp.dtype(x.dtype).itemsize

    # Resize formulation: fused kron operator for small spatial sizes, the
    # separable two-matmul form above the threshold (bounds VMEM and FLOPs).
    if not needs_resize:
        mode = "identity"
    elif hw_in * hw_out * in_bytes <= kron_max_bytes:
        mode = "kron"
    else:
        mode = "separable"

    w_const_bytes = c_out * c_in * in_bytes
    b_const_bytes = c_out * 4

    def const_bytes(bb):
        if mode == "kron":
            k = (bb * hw_in) * (bb * hw_out) * in_bytes
        elif mode == "separable":
            k = (w_in * w_r + h_in * h_r) * in_bytes
        else:
            k = 0
        # assume worst case (double-buffered) even though we request Buffered(1)
        return 2 * (k + w_const_bytes + b_const_bytes)

    bb = _choose_batch_block(
        n, hw_in, hw_out,
        in_bytes_per_img=c_in * hw_in * in_bytes,
        out_bytes_per_img=c_out * hw_out * out_bytes,
        const_bytes_fn=const_bytes,
        vmem_budget=gen["vmem_budget"], num_tc=gen["num_tc"],
        lane_align=gen["lane_align"])
    grid = (n // bb,)

    # ---- host-side constants & layout plumbing (not compute) ----------------
    w2d = conv_w.reshape(c_out, c_in).astype(mxu_dtype)
    b2d = conv_b.reshape(c_out, 1).astype(jnp.float32)
    # NCHW -> (C_in, N*H*W): lane dim = batch*spatial, channels on sublanes;
    # cast to bf16 here so HBM input traffic is halved.
    x2d = x.transpose(1, 0, 2, 3).reshape(c_in, n * hw_in).astype(mxu_dtype)

    const_args = []
    if mode == "kron":
        ah = _bilinear_matrix(h_r, h_in)                   # (H_r, H_in)
        aw = _bilinear_matrix(w_r, w_in)                   # (W_r, W_in)
        kt = jnp.kron(ah, aw).T                            # (HW_in, HW_out)
        # Fold the batch block into the operator (block diagonal) so both
        # matmuls stay 2-D and the store is lane-dense with no relayouts.
        ktb = jnp.kron(jnp.eye(bb, dtype=jnp.float32), kt).astype(mxu_dtype)
        const_args.append(ktb)
    elif mode == "separable":
        const_args.append(_bilinear_matrix(w_r, w_in).T.astype(mxu_dtype))  # (W_in, W_r)
        const_args.append(_bilinear_matrix(h_r, h_in).T.astype(mxu_dtype))  # (H_in, H_r)

    kernel = functools.partial(
        _stitch_kernel, mode=mode, conv_first=conv_first, bb=bb,
        c_in=c_in, c_out=c_out, h_in=h_in, w_in=w_in, h_out=h_r, w_out=w_r,
        mxu_dtype=mxu_dtype)

    # VMEM limit from actual resident bytes (+ headroom), capped per generation
    # so 64-MiB v7x parts are never over-asked.
    est = (2 * bb * (c_in * hw_in * in_bytes + c_out * hw_out * out_bytes)
           + const_bytes(bb) + (4 << 20))
    vmem_limit = int(min(max(est, 16 << 20), gen["vmem_cap"]))

    def build(single_buffer_consts):
        def const_spec(arr):
            rank = arr.ndim
            idx = lambda i, _r=rank: (0,) * _r
            if single_buffer_consts:
                # Grid-invariant operands never change block index; one VMEM
                # buffer is enough (reclaims VMEM on 64-MiB v7x parts).
                return pl.BlockSpec(arr.shape, idx, pipeline_mode=pl.Buffered(1))
            return pl.BlockSpec(arr.shape, idx)

        in_specs = [pl.BlockSpec((c_in, bb * hw_in), lambda i: (0, i))]
        in_specs += [const_spec(a) for a in const_args]
        in_specs += [const_spec(w2d), const_spec(b2d)]
        return pl.pallas_call(
            kernel,
            out_shape=jax.ShapeDtypeStruct((c_out, n * hw_out), x.dtype),
            grid_spec=pltpu.PrefetchScalarGridSpec(
                num_scalar_prefetch=0,
                grid=grid,
                in_specs=in_specs,
                out_specs=pl.BlockSpec((c_out, bb * hw_out), lambda i: (0, i)),
            ),
            compiler_params=pltpu.CompilerParams(
                dimension_semantics=("parallel",),
                vmem_limit_bytes=vmem_limit),
        )

    args = (x2d, *const_args, w2d, b2d)
    try:
        out2d = build(single_buffer_consts=True)(*args)
    except Exception:
        # Fallback if this Pallas build rejects pipeline_mode / Buffered(1);
        # correctness first, default double-buffered constants otherwise.
        out2d = build(single_buffer_consts=False)(*args)

    if mode == "separable":
        out = out2d.reshape(c_out, n, w_r, h_r).transpose(1, 0, 3, 2)
    else:
        out = out2d.reshape(c_out, n, h_r, w_r).transpose(1, 0, 2, 3)
    return out


# ---------------------------------------------------------------------------
# Pure-JAX reference (f32)
# ---------------------------------------------------------------------------
def _reference(x, conv_w, conv_b, out_spatial):
    n, c_in, h_in, w_in = x.shape
    c_out = conv_w.shape[0]
    h_r, w_r = out_spatial
    ah = _bilinear_matrix(h_r, h_in)
    aw = _bilinear_matrix(w_r, w_in)
    xf = x.astype(jnp.float32)
    xr = jnp.einsum("rh,nchw->ncrw", ah, xf)
    xr = jnp.einsum("sw,ncrw->ncrs", aw, xr)
    w2d = conv_w.reshape(c_out, c_in).astype(jnp.float32)
    out = jnp.einsum("oc,ncrs->nors", w2d, xr) + conv_b.reshape(1, -1, 1, 1)
    return out.astype(x.dtype)


if __name__ == "__main__":
    # in_shape = (4, 16, 16), out_shape = (8, 8, 8): the resize branch is active.
    N, C_IN, H_IN, W_IN = 2, 4, 16, 16
    C_OUT, H_OUT, W_OUT = 8, 8, 8

    key = jax.random.PRNGKey(0)
    kx, kw, kb = jax.random.split(key, 3)
    x = jax.random.normal(kx, (N, C_IN, H_IN, W_IN), jnp.float32)
    conv_w = jax.random.normal(kw, (C_OUT, C_IN, 1, 1), jnp.float32) * 0.1
    conv_b = jax.random.normal(kb, (C_OUT,), jnp.float32) * 0.1

    out = conv_stitching_forward(x, conv_w, conv_b, (H_OUT, W_OUT))
    out = jax.block_until_ready(out)
    ref = _reference(x, conv_w, conv_b, (H_OUT, W_OUT))
    assert out.shape == (N, C_OUT, H_OUT, W_OUT)
    # bf16 MXU inputs / f32 accumulation: ~1e-2 tolerance vs f32 reference.
    assert jnp.allclose(out, ref, rtol=1e-2, atol=1e-2), (
        float(jnp.max(jnp.abs(out - ref))))

    # Identity branch (in_shape spatial == out_shape spatial): no resize matrix
    # is built or passed at all.
    out_id = conv_stitching_forward(x, conv_w, conv_b, (H_IN, W_IN))
    out_id = jax.block_until_ready(out_id)
    ref_id = _reference(x, conv_w, conv_b, (H_IN, W_IN))
    assert out_id.shape == (N, C_OUT, H_IN, W_IN)
    assert jnp.allclose(out_id, ref_id, rtol=1e-2, atol=1e-2), (
        float(jnp.max(jnp.abs(out_id - ref_id))))

    print("KERNEL_OK")
</pallas_src>

<mosaic_0001>
module attributes {stable_mosaic.version = 11 : i64} {
  func.func @_stitch_kernel(%arg0: i32, %arg1: memref<4x512xbf16, #tpu.memory_space<vmem>>, %arg2: memref<512x128xbf16, #tpu.memory_space<vmem>>, %arg3: memref<8x4xbf16, #tpu.memory_space<vmem>>, %arg4: memref<8x1xf32, #tpu.memory_space<vmem>>, %arg5: memref<8x128xf32, #tpu.memory_space<vmem>>) attributes {dimension_semantics = [#tpu.dimension_semantics<parallel>], iteration_bounds = array<i64: 1>, scalar_prefetch = 0 : i64, scratch_operands = 0 : i64, tpu.core_type = #tpu.core_type<tc>, window_params = [{transform_indices = @transform_0, window_bounds = array<i64: 4, 512>}, {pipeline_mode = #tpu.pipeline_mode<synchronous>, transform_indices = @transform_1, window_bounds = array<i64: 512, 128>}, {pipeline_mode = #tpu.pipeline_mode<synchronous>, transform_indices = @transform_2, window_bounds = array<i64: 8, 4>}, {pipeline_mode = #tpu.pipeline_mode<synchronous>, transform_indices = @transform_3, window_bounds = array<i64: 8, 1>}, {transform_indices = @transform_4, window_bounds = array<i64: 8, 128>}]} {
    %c0 = arith.constant 0 : index
    %c0_0 = arith.constant 0 : index
    %0 = vector.load %arg1[%c0, %c0_0] : memref<4x512xbf16, #tpu.memory_space<vmem>>, vector<4x512xbf16>
    %c0_1 = arith.constant 0 : index
    %c0_2 = arith.constant 0 : index
    %1 = vector.load %arg3[%c0_1, %c0_2] : memref<8x4xbf16, #tpu.memory_space<vmem>>, vector<8x4xbf16>
    %c0_3 = arith.constant 0 : index
    %c0_4 = arith.constant 0 : index
    %2 = vector.load %arg4[%c0_3, %c0_4] : memref<8x1xf32, #tpu.memory_space<vmem>>, vector<8x1xf32>
    %c0_5 = arith.constant 0 : index
    %c0_6 = arith.constant 0 : index
    %3 = vector.load %arg2[%c0_5, %c0_6] : memref<512x128xbf16, #tpu.memory_space<vmem>>, vector<512x128xbf16>
    %cst = arith.constant dense<0.000000e+00> : vector<4x128xf32>
    %4 = tpu.matmul %0, %3, %cst {dimension_numbers = #tpu.dot_dimension_numbers<[1], [0], [0], [1], [0, 0, 1, 1], [], []>} : vector<4x512xbf16>, vector<512x128xbf16>, vector<4x128xf32> -> vector<4x128xf32>
    %5 = arith.truncf %4 : vector<4x128xf32> to vector<4x128xbf16>
    %cst_7 = arith.constant dense<0.000000e+00> : vector<8x128xf32>
    %6 = tpu.matmul %1, %5, %cst_7 {dimension_numbers = #tpu.dot_dimension_numbers<[1], [0], [0], [1], [0, 0, 1, 1], [], []>} : vector<8x4xbf16>, vector<4x128xbf16>, vector<8x128xf32> -> vector<8x128xf32>
    %7 = vector.broadcast %2 : vector<8x1xf32> to vector<8x128xf32>
    %8 = arith.addf %6, %7 : vector<8x128xf32>
    %c0_8 = arith.constant 0 : index
    %c0_9 = arith.constant 0 : index
    %9 = vector.load %arg5[%c0_8, %c0_9] : memref<8x128xf32, #tpu.memory_space<vmem>>, vector<8x128xf32>
    tpu.vector_store %arg5[%c0_8, %c0_9], %8 {strides = array<i32>} : memref<8x128xf32, #tpu.memory_space<vmem>>, vector<8x128xf32>,
    return
  }
  func.func @transform_0(%arg0: i32) -> (i32, i32) {
    %c0_i32 = arith.constant 0 : i32
    %c0_i32_0 = arith.constant 0 : i32
    return %c0_i32, %arg0 : i32, i32
  }
  func.func @transform_1(%arg0: i32) -> (i32, i32) {
    %c0_i32 = arith.constant 0 : i32
    %c0_i32_0 = arith.constant 0 : i32
    %c0_i32_1 = arith.constant 0 : i32
    return %c0_i32, %c0_i32_0 : i32, i32
  }
  func.func @transform_2(%arg0: i32) -> (i32, i32) {
    %c0_i32 = arith.constant 0 : i32
    %c0_i32_0 = arith.constant 0 : i32
    %c0_i32_1 = arith.constant 0 : i32
    return %c0_i32, %c0_i32_0 : i32, i32
  }
  func.func @transform_3(%arg0: i32) -> (i32, i32) {
    %c0_i32 = arith.constant 0 : i32
    %c0_i32_0 = arith.constant 0 : i32
    %c0_i32_1 = arith.constant 0 : i32
    return %c0_i32, %c0_i32_0 : i32, i32
  }
  func.func @transform_4(%arg0: i32) -> (i32, i32) {
    %c0_i32 = arith.constant 0 : i32
    %c0_i32_0 = arith.constant 0 : i32
    return %c0_i32, %arg0 : i32, i32
  }
}

module attributes {stable_mosaic.version = 11 : i64} {
  func.func @_stitch_kernel(%arg0: i32, %arg1: memref<4x512xbf16, #tpu.memory_space<vmem>>, %arg2: memref<512x128xbf16, #tpu.memory_space<vmem>>, %arg3: memref<8x4xbf16, #tpu.memory_space<vmem>>, %arg4: memref<8x1xf32, #tpu.memory_space<vmem>>, %arg5: memref<8x128xf32, #tpu.memory_space<vmem>>) attributes {dimension_semantics = [#tpu.dimension_semantics<parallel>], iteration_bounds = array<i64: 1>, scalar_prefetch = 0 : i64, scratch_operands = 0 : i64, tpu.core_type = #tpu.core_type<tc>, window_params = [{transform_indices = @transform_0, window_bounds = array<i64: 4, 512>}, {pipeline_mode = #tpu.pipeline_mode<synchronous>, transform_indices = @transform_1, window_bounds = array<i64: 512, 128>}, {pipeline_mode = #tpu.pipeline_mode<synchronous>, transform_indices = @transform_2, window_bounds = array<i64: 8, 4>}, {pipeline_mode = #tpu.pipeline_mode<synchronous>, transform_indices = @transform_3, window_bounds = array<i64: 8, 1>}, {transform_indices = @transform_4, window_bounds = array<i64: 8, 128>}]} {
    %c0 = arith.constant 0 : index
    %c0_0 = arith.constant 0 : index
    %0 = vector.load %arg1[%c0, %c0_0] : memref<4x512xbf16, #tpu.memory_space<vmem>>, vector<4x512xbf16>
    %c0_1 = arith.constant 0 : index
    %c0_2 = arith.constant 0 : index
    %1 = vector.load %arg3[%c0_1, %c0_2] : memref<8x4xbf16, #tpu.memory_space<vmem>>, vector<8x4xbf16>
    %c0_3 = arith.constant 0 : index
    %c0_4 = arith.constant 0 : index
    %2 = vector.load %arg4[%c0_3, %c0_4] : memref<8x1xf32, #tpu.memory_space<vmem>>, vector<8x1xf32>
    %c0_5 = arith.constant 0 : index
    %c0_6 = arith.constant 0 : index
    %3 = vector.load %arg2[%c0_5, %c0_6] : memref<512x128xbf16, #tpu.memory_space<vmem>>, vector<512x128xbf16>
    %cst = arith.constant dense<0.000000e+00> : vector<4x128xf32>
    %4 = tpu.matmul %0, %3, %cst {dimension_numbers = #tpu.dot_dimension_numbers<[1], [0], [0], [1], [0, 0, 1, 1], [], []>} : vector<4x512xbf16>, vector<512x128xbf16>, vector<4x128xf32> -> vector<4x128xf32>
    %5 = arith.truncf %4 : vector<4x128xf32> to vector<4x128xbf16>
    %cst_7 = arith.constant dense<0.000000e+00> : vector<8x128xf32>
    %6 = tpu.matmul %1, %5, %cst_7 {dimension_numbers = #tpu.dot_dimension_numbers<[1], [0], [0], [1], [0, 0, 1, 1], [], []>} : vector<8x4xbf16>, vector<4x128xbf16>, vector<8x128xf32> -> vector<8x128xf32>
    %7 = vector.broadcast %2 : vector<8x1xf32> to vector<8x128xf32>
    %8 = arith.addf %6, %7 : vector<8x128xf32>
    %c0_8 = arith.constant 0 : index
    %c0_9 = arith.constant 0 : index
    %9 = vector.load %arg5[%c0_8, %c0_9] : memref<8x128xf32, #tpu.memory_space<vmem>>, vector<8x128xf32>
    tpu.vector_store %arg5[%c0_8, %c0_9], %8 {strides = array<i32>} : memref<8x128xf32, #tpu.memory_space<vmem>>, vector<8x128xf32>,
    return
  }
  func.func @transform_0(%arg0: i32) -> (i32, i32) {
    %c0_i32 = arith.constant 0 : i32
    %c0_i32_0 = arith.constant 0 : i32
    return %c0_i32, %arg0 : i32, i32
  }
  func.func @transform_1(%arg0: i32) -> (i32, i32) {
    %c0_i32 = arith.constant 0 : i32
    %c0_i32_0 = arith.constant 0 : i32
    %c0_i32_1 = arith.constant 0 : i32
    return %c0_i32, %c0_i32_0 : i32, i32
  }
  func.func @transform_2(%arg0: i32) -> (i32, i32) {
    %c0_i32 = arith.constant 0 : i32
    %c0_i32_0 = arith.constant 0 : i32
    %c0_i32_1 = arith.constant 0 : i32
    return %c0_i32, %c0_i32_0 : i32, i32
  }
  func.func @transform_3(%arg0: i32) -> (i32, i32) {
    %c0_i32 = arith.constant 0 : i32
    %c0_i32_0 = arith.constant 0 : i32
    %c0_i32_1 = arith.constant 0 : i32
    return %c0_i32, %c0_i32_0 : i32, i32
  }
  func.func @transform_4(%arg0: i32) -> (i32, i32) {
    %c0_i32 = arith.constant 0 : i32
    %c0_i32_0 = arith.constant 0 : i32
    return %c0_i32, %arg0 : i32, i32
  }
}

</mosaic_0001>

<llo_original>
// kernel: tpu_custom_call.1
$region0: #{tpu_custom_call.1}
  #allocation0 [shape = 'u32[]', space=smem, size = 0x4, offset = 0x4, fixed_abs, tag = 'smem constant byte address 0x4 - core index']
  #allocation1 [shape = 'u32[144,128]{1,0:T(1,128)}', space=vmem, size = 0x12000, scoped, tag = 'internal scratch']
  %s0 = inlined_call_operand.vmem [shape: bf16[4,512], index: 0, kind: input, shape index: {}]
  %s1 = inlined_call_operand.hbm [shape: bf16[512,128], index: 1, kind: input, shape index: {}]
  %s2 = inlined_call_operand.vmem [shape: bf16[8,4], index: 2, kind: input, shape index: {}]
  %s3 = inlined_call_operand.vmem [shape: f32[8,1], index: 3, kind: input, shape index: {}]
  %s4 = inlined_call_operand.hbm [shape: f32[8,128], index: 4, kind: output, shape index: {}]
  %s5 = sld [smem:[#allocation0]]
  $region30: #{tpu_custom_call.1} parent=0
    _
  %s7 = ssub.s32 1, %s5
  %s8 = scalar_select 0, %s7, %s5
  $region1: #{tpu_custom_call.1} parent=0
    #allocation2 [shape = 'u8[131072]{0}', space=vmem, size = 0x20000, scoped, tag = 'input window, operand 1, single buffered']
    #allocation3 [shape = 's32[1]{0}', space=sflag, size = 0x4, scoped, tag = 'scoped memory for tpu_custom_call.1']
    #allocation4 [shape = 's32[1]{0}', space=sflag, size = 0x4, scoped, tag = 'scoped memory for tpu_custom_call.1']
    #allocation5 [shape = 'u8[4096]{0}', space=vmem, size = 0x1000, scoped, tag = 'output window, operand 0, single buffered']
    %9 = vsyncpa [#allocation3], 0
    %10 = vsyncpa [#allocation4], 0
    // Predicated region
    $region2: #{tpu_custom_call.1} parent=1 // pred_check
      _
    $region3: #{tpu_custom_call.1} parent=1 // pred_check_branch
      %12 = sbr.rel (0) target = $region5
    $region4: #{tpu_custom_call.1} parent=1 // pred_region
      _
    $region5: #{tpu_custom_call.1} parent=1 // pred_fallthru
      _
    // Predicated region
    $region6: #{tpu_custom_call.1} parent=1 // pred_check
      _
    $region7: #{tpu_custom_call.1} parent=1 // pred_check_branch
      %14 = sbr.rel (0) target = $region9
    $region8: #{tpu_custom_call.1} parent=1 // pred_region
      %s16 = ssub.s32 4096, 4096
      %17 = vsyncadd [#allocation3], %s16
      %s18 = sshll.u32 [#allocation2], 4
      %s19 = int_to_ptr.vmem [resolvable:$true] %s18
      %24 = dma.hbm_to_vmem [thread:$0]  %s1, 4096, %s19, [#allocation3], 64, 64, 4
    $region9: #{tpu_custom_call.1} parent=1 // pred_fallthru
      _
    // Predicated region
    $region10: #{tpu_custom_call.1} parent=1 // pred_check
      _
    $region11: #{tpu_custom_call.1} parent=1 // pred_check_branch
      %26 = sbr.rel (0) target = $region13
    $region12: #{tpu_custom_call.1} parent=1 // pred_region
      _
    $region13: #{tpu_custom_call.1} parent=1 // pred_fallthru
      _
    // Predicated region
    $region14: #{tpu_custom_call.1} parent=1 // pred_check
      _
    $region15: #{tpu_custom_call.1} parent=1 // pred_check_branch
      %28 = sbr.rel (0) target = $region17
    $region16: #{tpu_custom_call.1} parent=1 // pred_region
      _
    $region17: #{tpu_custom_call.1} parent=1 // pred_fallthru
      _
    // Predicated region
    $region18: #{tpu_custom_call.1} parent=1 // pred_check
      _
    $region19: #{tpu_custom_call.1} parent=1 // pred_check_branch
      %30 = sbr.rel (0) target = $region21
    $region20: #{tpu_custom_call.1} parent=1 // pred_region
      %31 = dma.done [#allocation3], 4096
    $region21: #{tpu_custom_call.1} parent=1 // pred_fallthru
      _
    %v33 = vld [vmem:[%s0] sm:$0xff]
    %v34 = vld [vmem:[%s2] sm:$0xf]
    %v35 = vld [vmem:[%s3] sm:$0xff]
    %v36 = vld [vmem:[#allocation2] sm:$0xf]
    %v37 = vld [vmem:[#allocation2 + $0x4] sm:$0xf]
    %v38 = vld [vmem:[#allocation2 + $0x8] sm:$0xf]
    %v39 = vld [vmem:[#allocation2 + $0xc] sm:$0xf]
    %v40 = vld [vmem:[#allocation2 + $0x10] sm:$0xf]
    %v41 = vld [vmem:[#allocation2 + $0x14] sm:$0xf]
    %v42 = vld [vmem:[#allocation2 + $0x18] sm:$0xf]
    %v43 = vld [vmem:[#allocation2 + $0x1c] sm:$0xf]
    %v44 = vld [vmem:[#allocation2 + $0x20] sm:$0xf]
    %v45 = vld [vmem:[#allocation2 + $0x24] sm:$0xf]
    %v46 = vld [vmem:[#allocation2 + $0x28] sm:$0xf]
    %v47 = vld [vmem:[#allocation2 + $0x2c] sm:$0xf]
    %v48 = vld [vmem:[#allocation2 + $0x30] sm:$0xf]
    %v49 = vld [vmem:[#allocation2 + $0x34] sm:$0xf]
    %v50 = vld [vmem:[#allocation2 + $0x38] sm:$0xf]
    %v51 = vld [vmem:[#allocation2 + $0x3c] sm:$0xf]
    %v52 = vld [vmem:[#allocation2 + $0x40] sm:$0xf]
    %v53 = vld [vmem:[#allocation2 + $0x44] sm:$0xf]
    %v54 = vld [vmem:[#allocation2 + $0x48] sm:$0xf]
    %v55 = vld [vmem:[#allocation2 + $0x4c] sm:$0xf]
    %v56 = vld [vmem:[#allocation2 + $0x50] sm:$0xf]
    %v57 = vld [vmem:[#allocation2 + $0x54] sm:$0xf]
    %v58 = vld [vmem:[#allocation2 + $0x58] sm:$0xf]
    %v59 = vld [vmem:[#allocation2 + $0x5c] sm:$0xf]
    %v60 = vld [vmem:[#allocation2 + $0x60] sm:$0xf]
    %v61 = vld [vmem:[#allocation2 + $0x64] sm:$0xf]
    %v62 = vld [vmem:[#allocation2 + $0x68] sm:$0xf]
    %v63 = vld [vmem:[#allocation2 + $0x6c] sm:$0xf]
    %v64 = vld [vmem:[#allocation2 + $0x70] sm:$0xf]
    %v65 = vld [vmem:[#allocation2 + $0x74] sm:$0xf]
    %v66 = vld [vmem:[#allocation2 + $0x78] sm:$0xf]
    %v67 = vld [vmem:[#allocation2 + $0x7c] sm:$0xf]
    %v68 = vld [vmem:[#allocation2 + $0x80] sm:$0xf]
    %v69 = vld [vmem:[#allocation2 + $0x84] sm:$0xf]
    %v70 = vld [vmem:[#allocation2 + $0x88] sm:$0xf]
    %v71 = vld [vmem:[#allocation2 + $0x8c] sm:$0xf]
    %v72 = vld [vmem:[#allocation2 + $0x90] sm:$0xf]
    %v73 = vld [vmem:[#allocation2 + $0x94] sm:$0xf]
    %v74 = vld [vmem:[#allocation2 + $0x98] sm:$0xf]
    %v75 = vld [vmem:[#allocation2 + $0x9c] sm:$0xf]
    %v76 = vld [vmem:[#allocation2 + $0xa0] sm:$0xf]
    %v77 = vld [vmem:[#allocation2 + $0xa4] sm:$0xf]
    %v78 = vld [vmem:[#allocation2 + $0xa8] sm:$0xf]
    %v79 = vld [vmem:[#allocation2 + $0xac] sm:$0xf]
    %v80 = vld [vmem:[#allocation2 + $0xb0] sm:$0xf]
    %v81 = vld [vmem:[#allocation2 + $0xb4] sm:$0xf]
    %v82 = vld [vmem:[#allocation2 + $0xb8] sm:$0xf]
    %v83 = vld [vmem:[#allocation2 + $0xbc] sm:$0xf]
    %v84 = vld [vmem:[#allocation2 + $0xc0] sm:$0xf]
    %v85 = vld [vmem:[#allocation2 + $0xc4] sm:$0xf]
    %v86 = vld [vmem:[#allocation2 + $0xc8] sm:$0xf]
    %v87 = vld [vmem:[#allocation2 + $0xcc] sm:$0xf]
    %v88 = vld [vmem:[#allocation2 + $0xd0] sm:$0xf]
    %v89 = vld [vmem:[#allocation2 + $0xd4] sm:$0xf]
    %v90 = vld [vmem:[#allocation2 + $0xd8] sm:$0xf]
    %v91 = vld [vmem:[#allocation2 + $0xdc] sm:$0xf]
    %v92 = vld [vmem:[#allocation2 + $0xe0] sm:$0xf]
    %v93 = vld [vmem:[#allocation2 + $0xe4] sm:$0xf]
    %v94 = vld [vmem:[#allocation2 + $0xe8] sm:$0xf]
    %v95 = vld [vmem:[#allocation2 + $0xec] sm:$0xf]
    %v96 = vld [vmem:[#allocation2 + $0xf0] sm:$0xf]
    %v97 = vld [vmem:[#allocation2 + $0xf4] sm:$0xf]
    %v98 = vld [vmem:[#allocation2 + $0xf8] sm:$0xf]
    %v99 = vld [vmem:[#allocation2 + $0xfc] sm:$0xf]
    %v101 = vcombine.high %v33, %v33
    %v103 = vunpack.c.l.s4 1983009808
    %v104 = vunpack.c.0.s8 %v103
    %v105 = vlaneseq
    %v106 = vshrl.u32 %v105, 7
    %v107 = vsub.s32 %v104, %v106
    %v108 = vrot.slane %v33, %v107
    %v110 = vunpack.c.l.s4 1983009808
    %v111 = vunpack.c.0.s8 %v110
    %v112 = vlaneseq
    %v113 = vshrl.u32 %v112, 7
    %v114 = vsub.s32 %v111, %v113
    %v115 = vrot.slane %v101, %v114
    %v116 = vcombine.high %v108, %v108
    %v117 = vcombine.high %v115, %v115
    %v186 = vunpack.c.l.b16 %v36
    %v187 = vunpack.c.l.b16 %v37
    %v188 = vunpack.c.l.b16 %v38
    %v189 = vunpack.c.l.b16 %v39
    %v190 = vunpack.c.l.b16 %v40
    %v191 = vunpack.c.l.b16 %v41
    %v192 = vunpack.c.l.b16 %v42
    %v193 = vunpack.c.l.b16 %v43
    %v194 = vunpack.c.l.b16 %v44
    %v195 = vunpack.c.l.b16 %v45
    %v196 = vunpack.c.l.b16 %v46
    %v197 = vunpack.c.l.b16 %v47
    %v198 = vunpack.c.l.b16 %v48
    %v199 = vunpack.c.l.b16 %v49
    %v200 = vunpack.c.l.b16 %v50
    %v201 = vunpack.c.l.b16 %v51
    %v202 = vunpack.c.l.b16 %v52
    %v203 = vunpack.c.l.b16 %v53
    %v204 = vunpack.c.l.b16 %v54
    %v205 = vunpack.c.l.b16 %v55
    %v206 = vunpack.c.l.b16 %v56
    %v207 = vunpack.c.l.b16 %v57
    %v208 = vunpack.c.l.b16 %v58
    %v209 = vunpack.c.l.b16 %v59
    %v210 = vunpack.c.l.b16 %v60
    %v211 = vunpack.c.l.b16 %v61
    %v212 = vunpack.c.l.b16 %v62
    %v213 = vunpack.c.l.b16 %v63
    %v214 = vunpack.c.l.b16 %v64
    %v215 = vunpack.c.l.b16 %v65
    %v216 = vunpack.c.l.b16 %v66
    %v217 = vunpack.c.l.b16 %v67
    %v218 = vunpack.c.l.b16 %v68
    %v219 = vunpack.c.l.b16 %v69
    %v220 = vunpack.c.l.b16 %v70
    %v221 = vunpack.c.l.b16 %v71
    %v222 = vunpack.c.l.b16 %v72
    %v223 = vunpack.c.l.b16 %v73
    %v224 = vunpack.c.l.b16 %v74
    %v225 = vunpack.c.l.b16 %v75
    %v226 = vunpack.c.l.b16 %v76
    %v227 = vunpack.c.l.b16 %v77
    %v228 = vunpack.c.l.b16 %v78
    %v229 = vunpack.c.l.b16 %v79
    %v230 = vunpack.c.l.b16 %v80
    %v231 = vunpack.c.l.b16 %v81
    %v232 = vunpack.c.l.b16 %v82
    %v233 = vunpack.c.l.b16 %v83
    %v234 = vunpack.c.l.b16 %v84
    %v235 = vunpack.c.l.b16 %v85
    %v236 = vunpack.c.l.b16 %v86
    %v237 = vunpack.c.l.b16 %v87
    %v238 = vunpack.c.l.b16 %v88
    %v239 = vunpack.c.l.b16 %v89
    %v240 = vunpack.c.l.b16 %v90
    %v241 = vunpack.c.l.b16 %v91
    %v242 = vunpack.c.l.b16 %v92
    %v243 = vunpack.c.l.b16 %v93
    %v244 = vunpack.c.l.b16 %v94
    %v245 = vunpack.c.l.b16 %v95
    %v246 = vunpack.c.l.b16 %v96
    %v247 = vunpack.c.l.b16 %v97
    %v248 = vunpack.c.l.b16 %v98
    %v249 = vunpack.c.l.b16 %v99
    %v250 = vpack.c.b16 %v187, %v186
    %v251 = vpack.c.b16 %v189, %v188
    %v252 = vpack.c.b16 %v191, %v190
    %v253 = vpack.c.b16 %v193, %v192
    %v254 = vpack.c.b16 %v195, %v194
    %v255 = vpack.c.b16 %v197, %v196
    %v256 = vpack.c.b16 %v199, %v198
    %v257 = vpack.c.b16 %v201, %v200
    %v258 = vpack.c.b16 %v203, %v202
    %v259 = vpack.c.b16 %v205, %v204
    %v260 = vpack.c.b16 %v207, %v206
    %v261 = vpack.c.b16 %v209, %v208
    %v262 = vpack.c.b16 %v211, %v210
    %v263 = vpack.c.b16 %v213, %v212
    %v264 = vpack.c.b16 %v215, %v214
    %v265 = vpack.c.b16 %v217, %v216
    %v266 = vpack.c.b16 %v219, %v218
    %v267 = vpack.c.b16 %v221, %v220
    %v268 = vpack.c.b16 %v223, %v222
    %v269 = vpack.c.b16 %v225, %v224
    %v270 = vpack.c.b16 %v227, %v226
    %v271 = vpack.c.b16 %v229, %v228
    %v272 = vpack.c.b16 %v231, %v230
    %v273 = vpack.c.b16 %v233, %v232
    %v274 = vpack.c.b16 %v235, %v234
    %v275 = vpack.c.b16 %v237, %v236
    %v276 = vpack.c.b16 %v239, %v238
    %v277 = vpack.c.b16 %v241, %v240
    %v278 = vpack.c.b16 %v243, %v242
    %v279 = vpack.c.b16 %v245, %v244
    %v280 = vpack.c.b16 %v247, %v246
    %v281 = vpack.c.b16 %v249, %v248
    %314 = vmatprep.subr.bf16.mxu0 0
    %315 = vmatpush1.bf16.msra.mxu0 %v257
    %316 = vmatprep.subr.bf16.mxu0 0
    %317 = vmatpush1.bf16.msra.mxu0 %v256
    %318 = vmatprep.subr.bf16.mxu0 0
    %319 = vmatpush1.bf16.msra.mxu0 %v255
    %320 = vmatprep.subr.bf16.mxu0 0
    %321 = vmatpush1.bf16.msra.mxu0 %v254
    %322 = vmatprep.subr.bf16.mxu0 0
    %323 = vmatpush1.bf16.msra.mxu0 %v253
    %324 = vmatprep.subr.bf16.mxu0 0
    %325 = vmatpush1.bf16.msra.mxu0 %v252
    %326 = vmatprep.subr.bf16.mxu0 0
    %327 = vmatpush1.bf16.msra.mxu0 %v251
    %328 = vmatprep.subr.bf16.mxu0 0
    %329 = vmatpush1.bf16.msra.mxu0 %v250
    %330 = vmatprep.subr.bf16.mxu0 0
    %331 = vmatpush2.bf16.msra.mxu0 %v265
    %332 = vmatprep.subr.bf16.mxu0 0
    %333 = vmatpush2.bf16.msra.mxu0 %v264
    %334 = vmatprep.subr.bf16.mxu0 0
    %335 = vmatpush2.bf16.msra.mxu0 %v263
    %336 = vmatprep.subr.bf16.mxu0 0
    %337 = vmatpush2.bf16.msra.mxu0 %v262
    %338 = vmatprep.subr.bf16.mxu0 0
    %339 = vmatpush2.bf16.msra.mxu0 %v261
    %340 = vmatprep.subr.bf16.mxu0 0
    %341 = vmatpush2.bf16.msra.mxu0 %v260
    %342 = vmatprep.subr.bf16.mxu0 0
    %343 = vmatpush2.bf16.msra.mxu0 %v259
    %344 = vmatprep.subr.bf16.mxu0 0
    %345 = vmatpush2.bf16.msra.mxu0 %v258
    %346 = vmatprep.mubr.bf16.mxu0 %v116
    %347 = vmatmul.mubr.bf16.gmra.mxu0 %v108
    %v348 = vpop.f32.mrf.mxu0
    %v349 = vadd.f32 0.0, %v348
    %v350 = vpop.f32.mrf.mxu0
    %v351 = vpop.f32.mrf.mxu0
    %v352 = vpop.f32.mrf.mxu0
    %353 = vdwg.mxu0
    %354 = vmatprep.subr.bf16.mxu0 0
    %355 = vmatpush1.bf16.msra.mxu0 %v273
    %356 = vmatprep.subr.bf16.mxu0 0
    %357 = vmatpush1.bf16.msra.mxu0 %v272
    %358 = vmatprep.subr.bf16.mxu0 0
    %359 = vmatpush1.bf16.msra.mxu0 %v271
    %360 = vmatprep.subr.bf16.mxu0 0
    %361 = vmatpush1.bf16.msra.mxu0 %v270
    %362 = vmatprep.subr.bf16.mxu0 0
    %363 = vmatpush1.bf16.msra.mxu0 %v269
    %364 = vmatprep.subr.bf16.mxu0 0
    %365 = vmatpush1.bf16.msra.mxu0 %v268
    %366 = vmatprep.subr.bf16.mxu0 0
    %367 = vmatpush1.bf16.msra.mxu0 %v267
    %368 = vmatprep.subr.bf16.mxu0 0
    %369 = vmatpush1.bf16.msra.mxu0 %v266
    %370 = vmatprep.subr.bf16.mxu0 0
    %371 = vmatpush2.bf16.msra.mxu0 %v281
    %372 = vmatprep.subr.bf16.mxu0 0
    %373 = vmatpush2.bf16.msra.mxu0 %v280
    %374 = vmatprep.subr.bf16.mxu0 0
    %375 = vmatpush2.bf16.msra.mxu0 %v279
    %376 = vmatprep.subr.bf16.mxu0 0
    %377 = vmatpush2.bf16.msra.mxu0 %v278
    %378 = vmatprep.subr.bf16.mxu0 0
    %379 = vmatpush2.bf16.msra.mxu0 %v277
    %380 = vmatprep.subr.bf16.mxu0 0
    %381 = vmatpush2.bf16.msra.mxu0 %v276
    %382 = vmatprep.subr.bf16.mxu0 0
    %383 = vmatpush2.bf16.msra.mxu0 %v275
    %384 = vmatprep.subr.bf16.mxu0 0
    %385 = vmatpush2.bf16.msra.mxu0 %v274
    %386 = vmatprep.mubr.bf16.mxu0 %v117
    %387 = vmatmul.mubr.bf16.gmra.mxu0 %v115
    %v388 = vpop.f32.mrf.mxu0
    %v389 = vadd.f32 %v349, %v388
    %v390 = vpop.f32.mrf.mxu0
    %v391 = vpop.f32.mrf.mxu0
    %v392 = vpop.f32.mrf.mxu0
    %393 = vdwg.mxu0
    %v394 = vpack.c.bf16 %v389, %v389
    %396 = vset.pattern.permute.xlu0 0
    %397 = vperm.xlu0 %396, %v35
    %v398 = vpop.permute.xlu0 %397
    %vm400 = vcmask 31744
    %v402 = vsel %vm400, %v34, 0
    %vm404 = vcmask 1041408
    %v406 = vsel %vm404, %v394, 0
    %408 = vmatprep.subr.bf16.mxu0 0
    %409 = vmatpush1.bf16.msra.mxu0 0
    %410 = vmatprep.subr.bf16.mxu0 0
    %411 = vmatpush1.bf16.msra.mxu0 0
    %412 = vmatprep.subr.bf16.mxu0 0
    %413 = vmatpush1.bf16.msra.mxu0 0
    %414 = vmatprep.subr.bf16.mxu0 0
    %415 = vmatpush1.bf16.msra.mxu0 0
    %416 = vmatprep.subr.bf16.mxu0 0
    %417 = vmatpush1.bf16.msra.mxu0 0
    %418 = vmatprep.subr.bf16.mxu0 0
    %419 = vmatpush1.bf16.msra.mxu0 0
    %420 = vmatprep.subr.bf16.mxu0 0
    %421 = vmatpush1.bf16.msra.mxu0 0
    %422 = vmatprep.subr.bf16.mxu0 0
    %423 = vmatpush1.bf16.msra.mxu0 %v406
    %424 = vmatprep.subr.bf16.mxu0 0
    %425 = vmatpush2.bf16.msra.mxu0 0
    %426 = vmatprep.subr.bf16.mxu0 0
    %427 = vmatpush2.bf16.msra.mxu0 0
    %428 = vmatprep.subr.bf16.mxu0 0
    %429 = vmatpush2.bf16.msra.mxu0 0
    %430 = vmatprep.subr.bf16.mxu0 0
    %431 = vmatpush2.bf16.msra.mxu0 0
    %432 = vmatprep.subr.bf16.mxu0 0
    %433 = vmatpush2.bf16.msra.mxu0 0
    %434 = vmatprep.subr.bf16.mxu0 0
    %435 = vmatpush2.bf16.msra.mxu0 0
    %436 = vmatprep.subr.bf16.mxu0 0
    %437 = vmatpush2.bf16.msra.mxu0 0
    %438 = vmatprep.subr.bf16.mxu0 0
    %439 = vmatpush2.bf16.msra.mxu0 0
    %440 = vmatprep.mubr.bf16.mxu0 0
    %441 = vmatmul.mubr.bf16.gmra.mxu0 %v402
    %v442 = vpop.f32.mrf.mxu0
    %v443 = vadd.f32 %v398, %v442
    %v444 = vpop.f32.mrf.mxu0
    %v445 = vpop.f32.mrf.mxu0
    %v446 = vpop.f32.mrf.mxu0
    %447 = vdwg.mxu0
    %448 = vst [vmem:[#allocation5] sm:$0xff] %v443
    // Predicated region
    $region22: #{tpu_custom_call.1} parent=1 // pred_check
      _
    $region23: #{tpu_custom_call.1} parent=1 // pred_check_branch
      %450 = sbr.rel (0) target = $region25
    $region24: #{tpu_custom_call.1} parent=1 // pred_region
      %s452 = ssub.s32 128, 128
      %453 = vsyncadd [#allocation4], %s452
      %s455 = sshll.u32 [#allocation5], 4
      %s456 = int_to_ptr.vmem [resolvable:$true] %s455
      %458 = dma.vmem_to_hbm [thread:$0]  %s456, 128, %s4, [#allocation4]
    $region25: #{tpu_custom_call.1} parent=1 // pred_fallthru
      _
    // Predicated region
    $region26: #{tpu_custom_call.1} parent=1 // pred_check
      _
    $region27: #{tpu_custom_call.1} parent=1 // pred_check_branch
      %460 = sbr.rel (0) target = $region29
    $region28: #{tpu_custom_call.1} parent=1 // pred_region
      %461 = dma.done [#allocation4], 128
    $region29: #{tpu_custom_call.1} parent=1 // pred_fallthru
      _
    %462 = vsyncpa [#allocation3], 1
    %463 = vsyncpa [#allocation4], 1

// kernel: tpu_custom_call.1
$region0: #{tpu_custom_call.1}
  #allocation0 [shape = 'u32[]', space=smem, size = 0x4, offset = 0x4, fixed_abs, tag = 'smem constant byte address 0x4 - core index']
  #allocation1 [shape = 'u32[144,128]{1,0:T(1,128)}', space=vmem, size = 0x12000, scoped, tag = 'internal scratch']
  %s0 = inlined_call_operand.vmem [shape: bf16[4,512], index: 0, kind: input, shape index: {}]
  %s1 = inlined_call_operand.hbm [shape: bf16[512,128], index: 1, kind: input, shape index: {}]
  %s2 = inlined_call_operand.vmem [shape: bf16[8,4], index: 2, kind: input, shape index: {}]
  %s3 = inlined_call_operand.vmem [shape: f32[8,1], index: 3, kind: input, shape index: {}]
  %s4 = inlined_call_operand.hbm [shape: f32[8,128], index: 4, kind: output, shape index: {}]
  %s5 = sld [smem:[#allocation0]]
  $region30: #{tpu_custom_call.1} parent=0
    _
  %s7 = ssub.s32 1, %s5
  %s8 = scalar_select 0, %s7, %s5
  $region1: #{tpu_custom_call.1} parent=0
    #allocation2 [shape = 'u8[131072]{0}', space=vmem, size = 0x20000, scoped, tag = 'input window, operand 1, single buffered']
    #allocation3 [shape = 's32[1]{0}', space=sflag, size = 0x4, scoped, tag = 'scoped memory for tpu_custom_call.1']
    #allocation4 [shape = 's32[1]{0}', space=sflag, size = 0x4, scoped, tag = 'scoped memory for tpu_custom_call.1']
    #allocation5 [shape = 'u8[4096]{0}', space=vmem, size = 0x1000, scoped, tag = 'output window, operand 0, single buffered']
    %9 = vsyncpa [#allocation3], 0
    %10 = vsyncpa [#allocation4], 0
    // Predicated region
    $region2: #{tpu_custom_call.1} parent=1 // pred_check
      _
    $region3: #{tpu_custom_call.1} parent=1 // pred_check_branch
      %12 = sbr.rel (0) target = $region5
    $region4: #{tpu_custom_call.1} parent=1 // pred_region
      _
    $region5: #{tpu_custom_call.1} parent=1 // pred_fallthru
      _
    // Predicated region
    $region6: #{tpu_custom_call.1} parent=1 // pred_check
      _
    $region7: #{tpu_custom_call.1} parent=1 // pred_check_branch
      %14 = sbr.rel (0) target = $region9
    $region8: #{tpu_custom_call.1} parent=1 // pred_region
      %s16 = ssub.s32 4096, 4096
      %17 = vsyncadd [#allocation3], %s16
      %s18 = sshll.u32 [#allocation2], 4
      %s19 = int_to_ptr.vmem [resolvable:$true] %s18
      %24 = dma.hbm_to_vmem [thread:$0]  %s1, 4096, %s19, [#allocation3], 64, 64, 4
    $region9: #{tpu_custom_call.1} parent=1 // pred_fallthru
      _
    // Predicated region
    $region10: #{tpu_custom_call.1} parent=1 // pred_check
      _
    $region11: #{tpu_custom_call.1} parent=1 // pred_check_branch
      %26 = sbr.rel (0) target = $region13
    $region12: #{tpu_custom_call.1} parent=1 // pred_region
      _
    $region13: #{tpu_custom_call.1} parent=1 // pred_fallthru
      _
    // Predicated region
    $region14: #{tpu_custom_call.1} parent=1 // pred_check
      _
    $region15: #{tpu_custom_call.1} parent=1 // pred_check_branch
      %28 = sbr.rel (0) target = $region17
    $region16: #{tpu_custom_call.1} parent=1 // pred_region
      _
    $region17: #{tpu_custom_call.1} parent=1 // pred_fallthru
      _
    // Predicated region
    $region18: #{tpu_custom_call.1} parent=1 // pred_check
      _
    $region19: #{tpu_custom_call.1} parent=1 // pred_check_branch
      %30 = sbr.rel (0) target = $region21
    $region20: #{tpu_custom_call.1} parent=1 // pred_region
      %31 = dma.done [#allocation3], 4096
    $region21: #{tpu_custom_call.1} parent=1 // pred_fallthru
      _
    %v33 = vld [vmem:[%s0] sm:$0xff]
    %v34 = vld [vmem:[%s2] sm:$0xf]
    %v35 = vld [vmem:[%s3] sm:$0xff]
    %v36 = vld [vmem:[#allocation2] sm:$0xf]
    %v37 = vld [vmem:[#allocation2 + $0x4] sm:$0xf]
    %v38 = vld [vmem:[#allocation2 + $0x8] sm:$0xf]
    %v39 = vld [vmem:[#allocation2 + $0xc] sm:$0xf]
    %v40 = vld [vmem:[#allocation2 + $0x10] sm:$0xf]
    %v41 = vld [vmem:[#allocation2 + $0x14] sm:$0xf]
    %v42 = vld [vmem:[#allocation2 + $0x18] sm:$0xf]
    %v43 = vld [vmem:[#allocation2 + $0x1c] sm:$0xf]
    %v44 = vld [vmem:[#allocation2 + $0x20] sm:$0xf]
    %v45 = vld [vmem:[#allocation2 + $0x24] sm:$0xf]
    %v46 = vld [vmem:[#allocation2 + $0x28] sm:$0xf]
    %v47 = vld [vmem:[#allocation2 + $0x2c] sm:$0xf]
    %v48 = vld [vmem:[#allocation2 + $0x30] sm:$0xf]
    %v49 = vld [vmem:[#allocation2 + $0x34] sm:$0xf]
    %v50 = vld [vmem:[#allocation2 + $0x38] sm:$0xf]
    %v51 = vld [vmem:[#allocation2 + $0x3c] sm:$0xf]
    %v52 = vld [vmem:[#allocation2 + $0x40] sm:$0xf]
    %v53 = vld [vmem:[#allocation2 + $0x44] sm:$0xf]
    %v54 = vld [vmem:[#allocation2 + $0x48] sm:$0xf]
    %v55 = vld [vmem:[#allocation2 + $0x4c] sm:$0xf]
    %v56 = vld [vmem:[#allocation2 + $0x50] sm:$0xf]
    %v57 = vld [vmem:[#allocation2 + $0x54] sm:$0xf]
    %v58 = vld [vmem:[#allocation2 + $0x58] sm:$0xf]
    %v59 = vld [vmem:[#allocation2 + $0x5c] sm:$0xf]
    %v60 = vld [vmem:[#allocation2 + $0x60] sm:$0xf]
    %v61 = vld [vmem:[#allocation2 + $0x64] sm:$0xf]
    %v62 = vld [vmem:[#allocation2 + $0x68] sm:$0xf]
    %v63 = vld [vmem:[#allocation2 + $0x6c] sm:$0xf]
    %v64 = vld [vmem:[#allocation2 + $0x70] sm:$0xf]
    %v65 = vld [vmem:[#allocation2 + $0x74] sm:$0xf]
    %v66 = vld [vmem:[#allocation2 + $0x78] sm:$0xf]
    %v67 = vld [vmem:[#allocation2 + $0x7c] sm:$0xf]
    %v68 = vld [vmem:[#allocation2 + $0x80] sm:$0xf]
    %v69 = vld [vmem:[#allocation2 + $0x84] sm:$0xf]
    %v70 = vld [vmem:[#allocation2 + $0x88] sm:$0xf]
    %v71 = vld [vmem:[#allocation2 + $0x8c] sm:$0xf]
    %v72 = vld [vmem:[#allocation2 + $0x90] sm:$0xf]
    %v73 = vld [vmem:[#allocation2 + $0x94] sm:$0xf]
    %v74 = vld [vmem:[#allocation2 + $0x98] sm:$0xf]
    %v75 = vld [vmem:[#allocation2 + $0x9c] sm:$0xf]
    %v76 = vld [vmem:[#allocation2 + $0xa0] sm:$0xf]
    %v77 = vld [vmem:[#allocation2 + $0xa4] sm:$0xf]
    %v78 = vld [vmem:[#allocation2 + $0xa8] sm:$0xf]
    %v79 = vld [vmem:[#allocation2 + $0xac] sm:$0xf]
    %v80 = vld [vmem:[#allocation2 + $0xb0] sm:$0xf]
    %v81 = vld [vmem:[#allocation2 + $0xb4] sm:$0xf]
    %v82 = vld [vmem:[#allocation2 + $0xb8] sm:$0xf]
    %v83 = vld [vmem:[#allocation2 + $0xbc] sm:$0xf]
    %v84 = vld [vmem:[#allocation2 + $0xc0] sm:$0xf]
    %v85 = vld [vmem:[#allocation2 + $0xc4] sm:$0xf]
    %v86 = vld [vmem:[#allocation2 + $0xc8] sm:$0xf]
    %v87 = vld [vmem:[#allocation2 + $0xcc] sm:$0xf]
    %v88 = vld [vmem:[#allocation2 + $0xd0] sm:$0xf]
    %v89 = vld [vmem:[#allocation2 + $0xd4] sm:$0xf]
    %v90 = vld [vmem:[#allocation2 + $0xd8] sm:$0xf]
    %v91 = vld [vmem:[#allocation2 + $0xdc] sm:$0xf]
    %v92 = vld [vmem:[#allocation2 + $0xe0] sm:$0xf]
    %v93 = vld [vmem:[#allocation2 + $0xe4] sm:$0xf]
    %v94 = vld [vmem:[#allocation2 + $0xe8] sm:$0xf]
    %v95 = vld [vmem:[#allocation2 + $0xec] sm:$0xf]
    %v96 = vld [vmem:[#allocation2 + $0xf0] sm:$0xf]
    %v97 = vld [vmem:[#allocation2 + $0xf4] sm:$0xf]
    %v98 = vld [vmem:[#allocation2 + $0xf8] sm:$0xf]
    %v99 = vld [vmem:[#allocation2 + $0xfc] sm:$0xf]
    %v101 = vcombine.high %v33, %v33
    %v103 = vunpack.c.l.s4 1983009808
    %v104 = vunpack.c.0.s8 %v103
    %v105 = vlaneseq
    %v106 = vshrl.u32 %v105, 7
    %v107 = vsub.s32 %v104, %v106
    %v108 = vrot.slane %v33, %v107
    %v110 = vunpack.c.l.s4 1983009808
    %v111 = vunpack.c.0.s8 %v110
    %v112 = vlaneseq
    %v113 = vshrl.u32 %v112, 7
    %v114 = vsub.s32 %v111, %v113
    %v115 = vrot.slane %v101, %v114
    %v116 = vcombine.high %v108, %v108
    %v117 = vcombine.high %v115, %v115
    %v186 = vunpack.c.l.b16 %v36
    %v187 = vunpack.c.l.b16 %v37
    %v188 = vunpack.c.l.b16 %v38
    %v189 = vunpack.c.l.b16 %v39
    %v190 = vunpack.c.l.b16 %v40
    %v191 = vunpack.c.l.b16 %v41
    %v192 = vunpack.c.l.b16 %v42
    %v193 = vunpack.c.l.b16 %v43
    %v194 = vunpack.c.l.b16 %v44
    %v195 = vunpack.c.l.b16 %v45
    %v196 = vunpack.c.l.b16 %v46
    %v197 = vunpack.c.l.b16 %v47
    %v198 = vunpack.c.l.b16 %v48
    %v199 = vunpack.c.l.b16 %v49
    %v200 = vunpack.c.l.b16 %v50
    %v201 = vunpack.c.l.b16 %v51
    %v202 = vunpack.c.l.b16 %v52
    %v203 = vunpack.c.l.b16 %v53
    %v204 = vunpack.c.l.b16 %v54
    %v205 = vunpack.c.l.b16 %v55
    %v206 = vunpack.c.l.b16 %v56
    %v207 = vunpack.c.l.b16 %v57
    %v208 = vunpack.c.l.b16 %v58
    %v209 = vunpack.c.l.b16 %v59
    %v210 = vunpack.c.l.b16 %v60
    %v211 = vunpack.c.l.b16 %v61
    %v212 = vunpack.c.l.b16 %v62
    %v213 = vunpack.c.l.b16 %v63
    %v214 = vunpack.c.l.b16 %v64
    %v215 = vunpack.c.l.b16 %v65
    %v216 = vunpack.c.l.b16 %v66
    %v217 = vunpack.c.l.b16 %v67
    %v218 = vunpack.c.l.b16 %v68
    %v219 = vunpack.c.l.b16 %v69
    %v220 = vunpack.c.l.b16 %v70
    %v221 = vunpack.c.l.b16 %v71
    %v222 = vunpack.c.l.b16 %v72
    %v223 = vunpack.c.l.b16 %v73
    %v224 = vunpack.c.l.b16 %v74
    %v225 = vunpack.c.l.b16 %v75
    %v226 = vunpack.c.l.b16 %v76
    %v227 = vunpack.c.l.b16 %v77
    %v228 = vunpack.c.l.b16 %v78
    %v229 = vunpack.c.l.b16 %v79
    %v230 = vunpack.c.l.b16 %v80
    %v231 = vunpack.c.l.b16 %v81
    %v232 = vunpack.c.l.b16 %v82
    %v233 = vunpack.c.l.b16 %v83
    %v234 = vunpack.c.l.b16 %v84
    %v235 = vunpack.c.l.b16 %v85
    %v236 = vunpack.c.l.b16 %v86
    %v237 = vunpack.c.l.b16 %v87
    %v238 = vunpack.c.l.b16 %v88
    %v239 = vunpack.c.l.b16 %v89
    %v240 = vunpack.c.l.b16 %v90
    %v241 = vunpack.c.l.b16 %v91
    %v242 = vunpack.c.l.b16 %v92
    %v243 = vunpack.c.l.b16 %v93
    %v244 = vunpack.c.l.b16 %v94
    %v245 = vunpack.c.l.b16 %v95
    %v246 = vunpack.c.l.b16 %v96
    %v247 = vunpack.c.l.b16 %v97
    %v248 = vunpack.c.l.b16 %v98
    %v249 = vunpack.c.l.b16 %v99
    %v250 = vpack.c.b16 %v187, %v186
    %v251 = vpack.c.b16 %v189, %v188
    %v252 = vpack.c.b16 %v191, %v190
    %v253 = vpack.c.b16 %v193, %v192
    %v254 = vpack.c.b16 %v195, %v194
    %v255 = vpack.c.b16 %v197, %v196
    %v256 = vpack.c.b16 %v199, %v198
    %v257 = vpack.c.b16 %v201, %v200
    %v258 = vpack.c.b16 %v203, %v202
    %v259 = vpack.c.b16 %v205, %v204
    %v260 = vpack.c.b16 %v207, %v206
    %v261 = vpack.c.b16 %v209, %v208
    %v262 = vpack.c.b16 %v211, %v210
    %v263 = vpack.c.b16 %v213, %v212
    %v264 = vpack.c.b16 %v215, %v214
    %v265 = vpack.c.b16 %v217, %v216
    %v266 = vpack.c.b16 %v219, %v218
    %v267 = vpack.c.b16 %v221, %v220
    %v268 = vpack.c.b16 %v223, %v222
    %v269 = vpack.c.b16 %v225, %v224
    %v270 = vpack.c.b16 %v227, %v226
    %v271 = vpack.c.b16 %v229, %v228
    %v272 = vpack.c.b16 %v231, %v230
    %v273 = vpack.c.b16 %v233, %v232
    %v274 = vpack.c.b16 %v235, %v234
    %v275 = vpack.c.b16 %v237, %v236
    %v276 = vpack.c.b16 %v239, %v238
    %v277 = vpack.c.b16 %v241, %v240
    %v278 = vpack.c.b16 %v243, %v242
    %v279 = vpack.c.b16 %v245, %v244
    %v280 = vpack.c.b16 %v247, %v246
    %v281 = vpack.c.b16 %v249, %v248
    %314 = vmatprep.subr.bf16.mxu0 0
    %315 = vmatpush1.bf16.msra.mxu0 %v257
    %316 = vmatprep.subr.bf16.mxu0 0
    %317 = vmatpush1.bf16.msra.mxu0 %v256
    %318 = vmatprep.subr.bf16.mxu0 0
    %319 = vmatpush1.bf16.msra.mxu0 %v255
    %320 = vmatprep.subr.bf16.mxu0 0
    %321 = vmatpush1.bf16.msra.mxu0 %v254
    %322 = vmatprep.subr.bf16.mxu0 0
    %323 = vmatpush1.bf16.msra.mxu0 %v253
    %324 = vmatprep.subr.bf16.mxu0 0
    %325 = vmatpush1.bf16.msra.mxu0 %v252
    %326 = vmatprep.subr.bf16.mxu0 0
    %327 = vmatpush1.bf16.msra.mxu0 %v251
    %328 = vmatprep.subr.bf16.mxu0 0
    %329 = vmatpush1.bf16.msra.mxu0 %v250
    %330 = vmatprep.subr.bf16.mxu0 0
    %331 = vmatpush2.bf16.msra.mxu0 %v265
    %332 = vmatprep.subr.bf16.mxu0 0
    %333 = vmatpush2.bf16.msra.mxu0 %v264
    %334 = vmatprep.subr.bf16.mxu0 0
    %335 = vmatpush2.bf16.msra.mxu0 %v263
    %336 = vmatprep.subr.bf16.mxu0 0
    %337 = vmatpush2.bf16.msra.mxu0 %v262
    %338 = vmatprep.subr.bf16.mxu0 0
    %339 = vmatpush2.bf16.msra.mxu0 %v261
    %340 = vmatprep.subr.bf16.mxu0 0
    %341 = vmatpush2.bf16.msra.mxu0 %v260
    %342 = vmatprep.subr.bf16.mxu0 0
    %343 = vmatpush2.bf16.msra.mxu0 %v259
    %344 = vmatprep.subr.bf16.mxu0 0
    %345 = vmatpush2.bf16.msra.mxu0 %v258
    %346 = vmatprep.mubr.bf16.mxu0 %v116
    %347 = vmatmul.mubr.bf16.gmra.mxu0 %v108
    %v348 = vpop.f32.mrf.mxu0
    %v349 = vadd.f32 0.0, %v348
    %v350 = vpop.f32.mrf.mxu0
    %v351 = vpop.f32.mrf.mxu0
    %v352 = vpop.f32.mrf.mxu0
    %353 = vdwg.mxu0
    %354 = vmatprep.subr.bf16.mxu0 0
    %355 = vmatpush1.bf16.msra.mxu0 %v273
    %356 = vmatprep.subr.bf16.mxu0 0
    %357 = vmatpush1.bf16.msra.mxu0 %v272
    %358 = vmatprep.subr.bf16.mxu0 0
    %359 = vmatpush1.bf16.msra.mxu0 %v271
    %360 = vmatprep.subr.bf16.mxu0 0
    %361 = vmatpush1.bf16.msra.mxu0 %v270
    %362 = vmatprep.subr.bf16.mxu0 0
    %363 = vmatpush1.bf16.msra.mxu0 %v269
    %364 = vmatprep.subr.bf16.mxu0 0
    %365 = vmatpush1.bf16.msra.mxu0 %v268
    %366 = vmatprep.subr.bf16.mxu0 0
    %367 = vmatpush1.bf16.msra.mxu0 %v267
    %368 = vmatprep.subr.bf16.mxu0 0
    %369 = vmatpush1.bf16.msra.mxu0 %v266
    %370 = vmatprep.subr.bf16.mxu0 0
    %371 = vmatpush2.bf16.msra.mxu0 %v281
    %372 = vmatprep.subr.bf16.mxu0 0
    %373 = vmatpush2.bf16.msra.mxu0 %v280
    %374 = vmatprep.subr.bf16.mxu0 0
    %375 = vmatpush2.bf16.msra.mxu0 %v279
    %376 = vmatprep.subr.bf16.mxu0 0
    %377 = vmatpush2.bf16.msra.mxu0 %v278
    %378 = vmatprep.subr.bf16.mxu0 0
    %379 = vmatpush2.bf16.msra.mxu0 %v277
    %380 = vmatprep.subr.bf16.mxu0 0
    %381 = vmatpush2.bf16.msra.mxu0 %v276
    %382 = vmatprep.subr.bf16.mxu0 0
    %383 = vmatpush2.bf16.msra.mxu0 %v275
    %384 = vmatprep.subr.bf16.mxu0 0
    %385 = vmatpush2.bf16.msra.mxu0 %v274
    %386 = vmatprep.mubr.bf16.mxu0 %v117
    %387 = vmatmul.mubr.bf16.gmra.mxu0 %v115
    %v388 = vpop.f32.mrf.mxu0
    %v389 = vadd.f32 %v349, %v388
    %v390 = vpop.f32.mrf.mxu0
    %v391 = vpop.f32.mrf.mxu0
    %v392 = vpop.f32.mrf.mxu0
    %393 = vdwg.mxu0
    %v394 = vpack.c.bf16 %v389, %v389
    %396 = vset.pattern.permute.xlu0 0
    %397 = vperm.xlu0 %396, %v35
    %v398 = vpop.permute.xlu0 %397
    %vm400 = vcmask 31744
    %v402 = vsel %vm400, %v34, 0
    %vm404 = vcmask 1041408
    %v406 = vsel %vm404, %v394, 0
    %408 = vmatprep.subr.bf16.mxu0 0
    %409 = vmatpush1.bf16.msra.mxu0 0
    %410 = vmatprep.subr.bf16.mxu0 0
    %411 = vmatpush1.bf16.msra.mxu0 0
    %412 = vmatprep.subr.bf16.mxu0 0
    %413 = vmatpush1.bf16.msra.mxu0 0
    %414 = vmatprep.subr.bf16.mxu0 0
    %415 = vmatpush1.bf16.msra.mxu0 0
    %416 = vmatprep.subr.bf16.mxu0 0
    %417 = vmatpush1.bf16.msra.mxu0 0
    %418 = vmatprep.subr.bf16.mxu0 0
    %419 = vmatpush1.bf16.msra.mxu0 0
    %420 = vmatprep.subr.bf16.mxu0 0
    %421 = vmatpush1.bf16.msra.mxu0 0
    %422 = vmatprep.subr.bf16.mxu0 0
    %423 = vmatpush1.bf16.msra.mxu0 %v406
    %424 = vmatprep.subr.bf16.mxu0 0
    %425 = vmatpush2.bf16.msra.mxu0 0
    %426 = vmatprep.subr.bf16.mxu0 0
    %427 = vmatpush2.bf16.msra.mxu0 0
    %428 = vmatprep.subr.bf16.mxu0 0
    %429 = vmatpush2.bf16.msra.mxu0 0
    %430 = vmatprep.subr.bf16.mxu0 0
    %431 = vmatpush2.bf16.msra.mxu0 0
    %432 = vmatprep.subr.bf16.mxu0 0
    %433 = vmatpush2.bf16.msra.mxu0 0
    %434 = vmatprep.subr.bf16.mxu0 0
    %435 = vmatpush2.bf16.msra.mxu0 0
    %436 = vmatprep.subr.bf16.mxu0 0
    %437 = vmatpush2.bf16.msra.mxu0 0
    %438 = vmatprep.subr.bf16.mxu0 0
    %439 = vmatpush2.bf16.msra.mxu0 0
    %440 = vmatprep.mubr.bf16.mxu0 0
    %441 = vmatmul.mubr.bf16.gmra.mxu0 %v402
    %v442 = vpop.f32.mrf.mxu0
    %v443 = vadd.f32 %v398, %v442
    %v444 = vpop.f32.mrf.mxu0
    %v445 = vpop.f32.mrf.mxu0
    %v446 = vpop.f32.mrf.mxu0
    %447 = vdwg.mxu0
    %448 = vst [vmem:[#allocation5] sm:$0xff] %v443
    // Predicated region
    $region22: #{tpu_custom_call.1} parent=1 // pred_check
      _
    $region23: #{tpu_custom_call.1} parent=1 // pred_check_branch
      %450 = sbr.rel (0) target = $region25
    $region24: #{tpu_custom_call.1} parent=1 // pred_region
      %s452 = ssub.s32 128, 128
      %453 = vsyncadd [#allocation4], %s452
      %s455 = sshll.u32 [#allocation5], 4
      %s456 = int_to_ptr.vmem [resolvable:$true] %s455
      %458 = dma.vmem_to_hbm [thread:$0]  %s456, 128, %s4, [#allocation4]
    $region25: #{tpu_custom_call.1} parent=1 // pred_fallthru
      _
    // Predicated region
    $region26: #{tpu_custom_call.1} parent=1 // pred_check
      _
    $region27: #{tpu_custom_call.1} parent=1 // pred_check_branch
      %460 = sbr.rel (0) target = $region29
    $region28: #{tpu_custom_call.1} parent=1 // pred_region
      %461 = dma.done [#allocation4], 128
    $region29: #{tpu_custom_call.1} parent=1 // pred_fallthru
      _
    %462 = vsyncpa [#allocation3], 1
    %463 = vsyncpa [#allocation4], 1

</llo_original>
